<compile_context>
chip_gen: v5e
topology: v5e:2x2
jax: 0.10.0
libtpu: 0.0.40
codegen_flags: <defaults>
</compile_context>

<pallas_src>
import functools

import jax
import jax.numpy as jnp
from jax.experimental import pallas as pl
from jax.experimental.pallas import tpu as pltpu

BN_EPS = 1e-5


def _round_up(x, m):
    return ((x + m - 1) // m) * m


def _pick_batch_tile(B, E_pad, H_pad, C_pad, budget_bytes=24 * 1024 * 1024):
    """Largest multiple-of-8 batch tile whose working set fits the VMEM budget."""
    # f32 bytes resident per batch-row: double-buffered input tile (2*E_pad),
    # double-buffered output tile (2*C_pad), intermediate activation (H_pad).
    per_row = 4 * (2 * E_pad + 2 * C_pad + H_pad)
    # Resident weights + biases (single-buffered: constant index_map).
    fixed = 4 * (E_pad * H_pad + H_pad * C_pad + H_pad + C_pad)
    avail = max(budget_bytes - fixed, 8 * per_row)
    tb = (avail // per_row // 8) * 8
    tb = max(8, min(1024, tb))
    tb = min(tb, _round_up(B, 8))
    return int(tb)


def fasttext_kernel(x_ref, w1_ref, b1_ref, w2_ref, b2_ref, o_ref):
    # x_ref : [TB, E_pad]  pooled embeddings (batch tile)
    # w1_ref: [E_pad, H_pad], b1_ref: [1, H_pad]   (BN1 folded in)
    # w2_ref: [H_pad, C_pad], b2_ref: [1, C_pad]   (BN2 folded in)
    # Dropout is identity at inference.
    # TODO(synk): training-mode dropout (mask + scale) not implemented.
    h = jnp.dot(x_ref[...], w1_ref[...], preferred_element_type=jnp.float32)
    h = jnp.maximum(h + b1_ref[...], 0.0)
    o = jnp.dot(h, w2_ref[...], preferred_element_type=jnp.float32) + b2_ref[...]
    o_ref[...] = o.astype(o_ref.dtype)


@functools.partial(jax.jit, static_argnames=())
def fasttext_forward(x_ids, params):
    """x_ids: [B, L] int32 token ids. Returns [B, num_classes] float32."""
    emb_table = params["embedding"]                       # [V, E]
    B, _ = x_ids.shape
    E = emb_table.shape[1]
    H = params["w1"].shape[1]
    C = params["w2"].shape[1]

    # --- Glue (plain JAX): embedding gather fused with mean-pooling so only
    #     [B, E] bytes enter the kernel.
    pooled = jnp.take(emb_table, x_ids, axis=0).mean(axis=1)   # [B, E] f32

    # --- Fold inference BatchNorm exactly into the linear layers.
    s1 = params["bn1_gamma"] * jax.lax.rsqrt(params["bn1_var"] + BN_EPS)   # [1, H]
    w1 = params["w1"] * s1                                                  # [E, H]
    b1 = (params["b1"] - params["bn1_mean"]) * s1 + params["bn1_beta"]      # [1, H]
    s2 = params["bn2_gamma"] * jax.lax.rsqrt(params["bn2_var"] + BN_EPS)    # [1, C]
    w2 = params["w2"] * s2                                                  # [H, C]
    b2 = (params["b2"] - params["bn2_mean"]) * s2 + params["bn2_beta"]      # [1, C]

    # --- Pad feature dims to lane-dense multiples of 128; tile the batch.
    E_pad = _round_up(E, 128)
    H_pad = _round_up(H, 128)
    C_pad = _round_up(C, 128)
    TB = _pick_batch_tile(B, E_pad, H_pad, C_pad)
    B_pad = _round_up(B, TB)

    pooled_p = jnp.pad(pooled, ((0, B_pad - B), (0, E_pad - E)))
    w1_p = jnp.pad(w1, ((0, E_pad - E), (0, H_pad - H)))
    b1_p = jnp.pad(b1, ((0, 0), (0, H_pad - H)))
    w2_p = jnp.pad(w2, ((0, H_pad - H), (0, C_pad - C)))
    b2_p = jnp.pad(b2, ((0, 0), (0, C_pad - C)))

    grid = (B_pad // TB,)
    out_padded = pl.pallas_call(
        fasttext_kernel,
        out_shape=jax.ShapeDtypeStruct((B_pad, C_pad), jnp.float32),
        grid_spec=pltpu.PrefetchScalarGridSpec(
            num_scalar_prefetch=0,
            grid=grid,
            in_specs=[
                pl.BlockSpec((TB, E_pad), lambda i: (i, 0)),      # pooled batch tile
                pl.BlockSpec((E_pad, H_pad), lambda i: (0, 0)),   # w1 (resident)
                pl.BlockSpec((1, H_pad), lambda i: (0, 0)),       # b1 (resident)
                pl.BlockSpec((H_pad, C_pad), lambda i: (0, 0)),   # w2 (resident)
                pl.BlockSpec((1, C_pad), lambda i: (0, 0)),       # b2 (resident)
            ],
            out_specs=pl.BlockSpec((TB, C_pad), lambda i: (i, 0)),
        ),
        compiler_params=pltpu.CompilerParams(
            dimension_semantics=("parallel",),
            vmem_limit_bytes=32 * 1024 * 1024,
        ),
    )(pooled_p, w1_p, b1_p, w2_p, b2_p)

    return out_padded[:B, :C]


def init_params(key, n_vocab, embedding_dim, hidden_size, num_classes):
    k_emb, k_w1, k_w2 = jax.random.split(key, 3)

    # nn.Embedding default init: N(0, 1), padding_idx row (= n_vocab - 1) zeroed.
    emb = jax.random.normal(k_emb, (n_vocab, embedding_dim), dtype=jnp.float32)
    emb = emb.at[n_vocab - 1].set(0.0)

    def xavier_normal(k, fan_in, fan_out):
        std = jnp.sqrt(2.0 / (fan_in + fan_out))
        # stored as [in, out] (transposed vs PyTorch [out, in])
        return std * jax.random.normal(k, (fan_in, fan_out), dtype=jnp.float32)

    return {
        "embedding": emb,
        "w1": xavier_normal(k_w1, embedding_dim, hidden_size),
        "b1": jnp.zeros((1, hidden_size), jnp.float32),
        "bn1_gamma": jnp.ones((1, hidden_size), jnp.float32),
        "bn1_beta": jnp.zeros((1, hidden_size), jnp.float32),
        "bn1_mean": jnp.zeros((1, hidden_size), jnp.float32),
        "bn1_var": jnp.ones((1, hidden_size), jnp.float32),
        "w2": xavier_normal(k_w2, hidden_size, num_classes),
        "b2": jnp.zeros((1, num_classes), jnp.float32),
        "bn2_gamma": jnp.ones((1, num_classes), jnp.float32),
        "bn2_beta": jnp.zeros((1, num_classes), jnp.float32),
        "bn2_mean": jnp.zeros((1, num_classes), jnp.float32),
        "bn2_var": jnp.ones((1, num_classes), jnp.float32),
    }


if __name__ == "__main__":
    # Small, module-consistent shapes.
    n_vocab, embedding_dim, hidden_size, num_classes = 50, 32, 32, 8
    batch, seq_len = 2, 8

    key = jax.random.PRNGKey(0)
    k_params, k_ids = jax.random.split(key)

    params = init_params(k_params, n_vocab, embedding_dim, hidden_size, num_classes)
    x_ids = jax.random.randint(k_ids, (batch, seq_len), 0, n_vocab, dtype=jnp.int32)

    out = fasttext_forward(x_ids, params)
    jax.block_until_ready(out)

    assert out.shape == (batch, num_classes)
    assert out.dtype == jnp.float32

    # Pure-JAX reference (un-folded BN path, PyTorch inference semantics).
    emb = jnp.take(params["embedding"], x_ids, axis=0).mean(axis=1)
    h = emb @ params["w1"] + params["b1"]
    h = (h - params["bn1_mean"]) / jnp.sqrt(params["bn1_var"] + BN_EPS)
    h = h * params["bn1_gamma"] + params["bn1_beta"]
    h = jnp.maximum(h, 0.0)
    ref = h @ params["w2"] + params["b2"]
    ref = (ref - params["bn2_mean"]) / jnp.sqrt(params["bn2_var"] + BN_EPS)
    ref = ref * params["bn2_gamma"] + params["bn2_beta"]
    assert jnp.allclose(out, ref, atol=1e-4, rtol=1e-4), (
        f"max abs err {jnp.max(jnp.abs(out - ref))}"
    )

    print("KERNEL_OK")
</pallas_src>

<mosaic_0001>
module attributes {stable_mosaic.version = 11 : i64} {
  func.func @fasttext_kernel(%arg0: i32, %arg1: memref<8x128xf32, #tpu.memory_space<vmem>>, %arg2: memref<128x128xf32, #tpu.memory_space<vmem>>, %arg3: memref<1x128xf32, #tpu.memory_space<vmem>>, %arg4: memref<128x128xf32, #tpu.memory_space<vmem>>, %arg5: memref<1x128xf32, #tpu.memory_space<vmem>>, %arg6: memref<8x128xf32, #tpu.memory_space<vmem>>) attributes {dimension_semantics = [#tpu.dimension_semantics<parallel>], iteration_bounds = array<i64: 1>, scalar_prefetch = 0 : i64, scratch_operands = 0 : i64, tpu.core_type = #tpu.core_type<tc>, window_params = [{transform_indices = @transform_0, window_bounds = array<i64: 8, 128>}, {pipeline_mode = #tpu.pipeline_mode<synchronous>, transform_indices = @transform_1, window_bounds = array<i64: 128, 128>}, {pipeline_mode = #tpu.pipeline_mode<synchronous>, transform_indices = @transform_2, window_bounds = array<i64: 1, 128>}, {pipeline_mode = #tpu.pipeline_mode<synchronous>, transform_indices = @transform_3, window_bounds = array<i64: 128, 128>}, {pipeline_mode = #tpu.pipeline_mode<synchronous>, transform_indices = @transform_4, window_bounds = array<i64: 1, 128>}, {transform_indices = @transform_5, window_bounds = array<i64: 8, 128>}]} {
    %c0 = arith.constant 0 : index
    %c0_0 = arith.constant 0 : index
    %0 = vector.load %arg1[%c0, %c0_0] : memref<8x128xf32, #tpu.memory_space<vmem>>, vector<8x128xf32>
    %c0_1 = arith.constant 0 : index
    %c0_2 = arith.constant 0 : index
    %1 = vector.load %arg2[%c0_1, %c0_2] : memref<128x128xf32, #tpu.memory_space<vmem>>, vector<128x128xf32>
    %cst = arith.constant dense<0.000000e+00> : vector<8x128xf32>
    %2 = tpu.matmul %0, %1, %cst {dimension_numbers = #tpu.dot_dimension_numbers<[1], [0], [0], [1], [0, 0, 1, 1], [], []>} : vector<8x128xf32>, vector<128x128xf32>, vector<8x128xf32> -> vector<8x128xf32>
    %c0_3 = arith.constant 0 : index
    %c0_4 = arith.constant 0 : index
    %3 = vector.load %arg3[%c0_3, %c0_4] : memref<1x128xf32, #tpu.memory_space<vmem>>, vector<1x128xf32>
    %4 = vector.broadcast %3 : vector<1x128xf32> to vector<8x128xf32>
    %5 = arith.addf %2, %4 : vector<8x128xf32>
    %cst_5 = arith.constant 0.000000e+00 : f32
    %6 = vector.broadcast %cst_5 : f32 to vector<8x128xf32>
    %7 = arith.maximumf %5, %6 : vector<8x128xf32>
    %c0_6 = arith.constant 0 : index
    %c0_7 = arith.constant 0 : index
    %8 = vector.load %arg4[%c0_6, %c0_7] : memref<128x128xf32, #tpu.memory_space<vmem>>, vector<128x128xf32>
    %cst_8 = arith.constant dense<0.000000e+00> : vector<8x128xf32>
    %9 = tpu.matmul %7, %8, %cst_8 {dimension_numbers = #tpu.dot_dimension_numbers<[1], [0], [0], [1], [0, 0, 1, 1], [], []>} : vector<8x128xf32>, vector<128x128xf32>, vector<8x128xf32> -> vector<8x128xf32>
    %c0_9 = arith.constant 0 : index
    %c0_10 = arith.constant 0 : index
    %10 = vector.load %arg5[%c0_9, %c0_10] : memref<1x128xf32, #tpu.memory_space<vmem>>, vector<1x128xf32>
    %11 = vector.broadcast %10 : vector<1x128xf32> to vector<8x128xf32>
    %12 = arith.addf %9, %11 : vector<8x128xf32>
    %c0_11 = arith.constant 0 : index
    %c0_12 = arith.constant 0 : index
    %13 = vector.load %arg6[%c0_11, %c0_12] : memref<8x128xf32, #tpu.memory_space<vmem>>, vector<8x128xf32>
    tpu.vector_store %arg6[%c0_11, %c0_12], %12 {strides = array<i32>} : memref<8x128xf32, #tpu.memory_space<vmem>>, vector<8x128xf32>,
    return
  }
  func.func @transform_0(%arg0: i32) -> (i32, i32) {
    %c0_i32 = arith.constant 0 : i32
    %c0_i32_0 = arith.constant 0 : i32
    return %arg0, %c0_i32 : i32, i32
  }
  func.func @transform_1(%arg0: i32) -> (i32, i32) {
    %c0_i32 = arith.constant 0 : i32
    %c0_i32_0 = arith.constant 0 : i32
    %c0_i32_1 = arith.constant 0 : i32
    return %c0_i32, %c0_i32_0 : i32, i32
  }
  func.func @transform_2(%arg0: i32) -> (i32, i32) {
    %c0_i32 = arith.constant 0 : i32
    %c0_i32_0 = arith.constant 0 : i32
    %c0_i32_1 = arith.constant 0 : i32
    return %c0_i32, %c0_i32_0 : i32, i32
  }
  func.func @transform_3(%arg0: i32) -> (i32, i32) {
    %c0_i32 = arith.constant 0 : i32
    %c0_i32_0 = arith.constant 0 : i32
    %c0_i32_1 = arith.constant 0 : i32
    return %c0_i32, %c0_i32_0 : i32, i32
  }
  func.func @transform_4(%arg0: i32) -> (i32, i32) {
    %c0_i32 = arith.constant 0 : i32
    %c0_i32_0 = arith.constant 0 : i32
    %c0_i32_1 = arith.constant 0 : i32
    return %c0_i32, %c0_i32_0 : i32, i32
  }
  func.func @transform_5(%arg0: i32) -> (i32, i32) {
    %c0_i32 = arith.constant 0 : i32
    %c0_i32_0 = arith.constant 0 : i32
    return %arg0, %c0_i32 : i32, i32
  }
}

</mosaic_0001>

<llo_original>
// kernel: fasttext_forward.1
$region0: #{fasttext_forward.1}
  #allocation0 [shape = 'u32[]', space=smem, size = 0x4, offset = 0x4, fixed_abs, tag = 'smem constant byte address 0x4 - core index']
  #allocation1 [shape = 'u32[72,128]{1,0:T(1,128)}', space=vmem, size = 0x9000, scoped, tag = 'internal scratch']
  %s0 = inlined_call_operand.vmem [shape: f32[8,128], index: 0, kind: input, shape index: {}]
  %s1 = inlined_call_operand.vmem [shape: f32[128,128], index: 1, kind: input, shape index: {}]
  %s2 = inlined_call_operand.vmem [shape: f32[1,128], index: 2, kind: input, shape index: {}]
  %s3 = inlined_call_operand.vmem [shape: f32[128,128], index: 3, kind: input, shape index: {}]
  %s4 = inlined_call_operand.vmem [shape: f32[1,128], index: 4, kind: input, shape index: {}]
  %s5 = inlined_call_operand.vmem [shape: f32[8,128], index: 5, kind: output, shape index: {}]
  %s6 = sld [smem:[#allocation0]]
  $region30: #{fasttext_forward.1} parent=0
    _
  %s8 = ssub.s32 1, %s6
  %s9 = scalar_select 0, %s8, %s6
  // Predicated region
  $region2: #{fasttext_forward.1} parent=0 // pred_check
    _
  $region3: #{fasttext_forward.1} parent=0 // pred_check_branch
    %11 = sbr.rel (0) target = $region5
  $region4: #{fasttext_forward.1} parent=0 // pred_region
    _
  $region5: #{fasttext_forward.1} parent=0 // pred_fallthru
    _
  // Predicated region
  $region6: #{fasttext_forward.1} parent=0 // pred_check
    _
  $region7: #{fasttext_forward.1} parent=0 // pred_check_branch
    %13 = sbr.rel (0) target = $region9
  $region8: #{fasttext_forward.1} parent=0 // pred_region
    _
  $region9: #{fasttext_forward.1} parent=0 // pred_fallthru
    _
  // Predicated region
  $region10: #{fasttext_forward.1} parent=0 // pred_check
    _
  $region11: #{fasttext_forward.1} parent=0 // pred_check_branch
    %15 = sbr.rel (0) target = $region13
  $region12: #{fasttext_forward.1} parent=0 // pred_region
    _
  $region13: #{fasttext_forward.1} parent=0 // pred_fallthru
    _
  // Predicated region
  $region14: #{fasttext_forward.1} parent=0 // pred_check
    _
  $region15: #{fasttext_forward.1} parent=0 // pred_check_branch
    %17 = sbr.rel (0) target = $region17
  $region16: #{fasttext_forward.1} parent=0 // pred_region
    _
  $region17: #{fasttext_forward.1} parent=0 // pred_fallthru
    _
  // Predicated region
  $region18: #{fasttext_forward.1} parent=0 // pred_check
    _
  $region19: #{fasttext_forward.1} parent=0 // pred_check_branch
    %19 = sbr.rel (0) target = $region21
  $region20: #{fasttext_forward.1} parent=0 // pred_region
    _
  $region21: #{fasttext_forward.1} parent=0 // pred_fallthru
    _
  %v20 = vld [vmem:[%s0] sm:$0xff]
  %v21 = vld [vmem:[%s1] sm:$0xff]
  %v22 = vld [vmem:[%s1 + $0x8] sm:$0xff]
  %v23 = vld [vmem:[%s1 + $0x10] sm:$0xff]
  %v24 = vld [vmem:[%s1 + $0x18] sm:$0xff]
  %v25 = vld [vmem:[%s1 + $0x20] sm:$0xff]
  %v26 = vld [vmem:[%s1 + $0x28] sm:$0xff]
  %v27 = vld [vmem:[%s1 + $0x30] sm:$0xff]
  %v28 = vld [vmem:[%s1 + $0x38] sm:$0xff]
  %v29 = vld [vmem:[%s1 + $0x40] sm:$0xff]
  %v30 = vld [vmem:[%s1 + $0x48] sm:$0xff]
  %v31 = vld [vmem:[%s1 + $0x50] sm:$0xff]
  %v32 = vld [vmem:[%s1 + $0x58] sm:$0xff]
  %v33 = vld [vmem:[%s1 + $0x60] sm:$0xff]
  %v34 = vld [vmem:[%s1 + $0x68] sm:$0xff]
  %v35 = vld [vmem:[%s1 + $0x70] sm:$0xff]
  %v36 = vld [vmem:[%s1 + $0x78] sm:$0xff]
  %v37 = vld [vmem:[%s2] sm:$0x1]
  %v39 = vperm.slane %v37, 0
  %41 = vmatpush.msra.mxu0 %v36
  %42 = vmatpush.msra.mxu0 %v35
  %43 = vmatpush.msra.mxu0 %v34
  %44 = vmatpush.msra.mxu0 %v33
  %45 = vmatpush.msra.mxu0 %v32
  %46 = vmatpush.msra.mxu0 %v31
  %47 = vmatpush.msra.mxu0 %v30
  %48 = vmatpush.msra.mxu0 %v29
  %49 = vmatpush.msra.mxu0 %v28
  %50 = vmatpush.msra.mxu0 %v27
  %51 = vmatpush.msra.mxu0 %v26
  %52 = vmatpush.msra.mxu0 %v25
  %53 = vmatpush.msra.mxu0 %v24
  %54 = vmatpush.msra.mxu0 %v23
  %55 = vmatpush.msra.mxu0 %v22
  %56 = vmatpush.msra.mxu0 %v21
  %57 = vmatmul.f32.gmra.mxu0 %v20
  %v58 = vpop.f32.mrf.mxu0
  %v59 = vadd.f32 %v39, %v58
  %60 = vdwg.mxu0
  %v61 = vmax.f32 %v59, 0.0
  %v62 = vld [vmem:[%s3] sm:$0xff]
  %v63 = vld [vmem:[%s3 + $0x8] sm:$0xff]
  %v64 = vld [vmem:[%s3 + $0x10] sm:$0xff]
  %v65 = vld [vmem:[%s3 + $0x18] sm:$0xff]
  %v66 = vld [vmem:[%s3 + $0x20] sm:$0xff]
  %v67 = vld [vmem:[%s3 + $0x28] sm:$0xff]
  %v68 = vld [vmem:[%s3 + $0x30] sm:$0xff]
  %v69 = vld [vmem:[%s3 + $0x38] sm:$0xff]
  %v70 = vld [vmem:[%s3 + $0x40] sm:$0xff]
  %v71 = vld [vmem:[%s3 + $0x48] sm:$0xff]
  %v72 = vld [vmem:[%s3 + $0x50] sm:$0xff]
  %v73 = vld [vmem:[%s3 + $0x58] sm:$0xff]
  %v74 = vld [vmem:[%s3 + $0x60] sm:$0xff]
  %v75 = vld [vmem:[%s3 + $0x68] sm:$0xff]
  %v76 = vld [vmem:[%s3 + $0x70] sm:$0xff]
  %v77 = vld [vmem:[%s3 + $0x78] sm:$0xff]
  %v78 = vld [vmem:[%s4] sm:$0x1]
  %v80 = vperm.slane %v78, 0
  %82 = vmatpush.msra.mxu0 %v77
  %83 = vmatpush.msra.mxu0 %v76
  %84 = vmatpush.msra.mxu0 %v75
  %85 = vmatpush.msra.mxu0 %v74
  %86 = vmatpush.msra.mxu0 %v73
  %87 = vmatpush.msra.mxu0 %v72
  %88 = vmatpush.msra.mxu0 %v71
  %89 = vmatpush.msra.mxu0 %v70
  %90 = vmatpush.msra.mxu0 %v69
  %91 = vmatpush.msra.mxu0 %v68
  %92 = vmatpush.msra.mxu0 %v67
  %93 = vmatpush.msra.mxu0 %v66
  %94 = vmatpush.msra.mxu0 %v65
  %95 = vmatpush.msra.mxu0 %v64
  %96 = vmatpush.msra.mxu0 %v63
  %97 = vmatpush.msra.mxu0 %v62
  %98 = vmatmul.f32.gmra.mxu0 %v61
  %v99 = vpop.f32.mrf.mxu0
  %v100 = vadd.f32 %v80, %v99
  %101 = vdwg.mxu0
  %102 = vst [vmem:[%s5] sm:$0xff] %v100
  // Predicated region
  $region22: #{fasttext_forward.1} parent=0 // pred_check
    _
  $region23: #{fasttext_forward.1} parent=0 // pred_check_branch
    %104 = sbr.rel (0) target = $region25
  $region24: #{fasttext_forward.1} parent=0 // pred_region
    _
  $region25: #{fasttext_forward.1} parent=0 // pred_fallthru
    _
  // Predicated region
  $region26: #{fasttext_forward.1} parent=0 // pred_check
    _
  $region27: #{fasttext_forward.1} parent=0 // pred_check_branch
    %106 = sbr.rel (0) target = $region29
  $region28: #{fasttext_forward.1} parent=0 // pred_region
    _
  $region29: #{fasttext_forward.1} parent=0 // pred_fallthru
    _

</llo_original>
